<compile_context>
chip_gen: v7x
topology: tpu7x:2x2x1
jax: 0.10.0
libtpu: 0.0.40
codegen_flags: <defaults>
</compile_context>

<pallas_src>
import jax
import jax.numpy as jnp
from jax.experimental import pallas as pl
from jax.experimental.pallas import tpu as pltpu

LANES = 128
ACC_SUBLANES = 8                       # accumulator = one f32 (8, 128) vreg
MAX_BLOCK_BYTES = 4 * 1024 * 1024      # per input per pipeline buffer
VMEM_LIMIT_BYTES = 32 * 1024 * 1024    # 2 inputs x 2 buffers x 4 MiB + slack
NUM_SHARDS = 2                         # megacore parallel axis (v7x); safe on 1-TC chips
DATA_RANGE = 255.0


def _cdiv(a, b):
    return -(-a // b)


def _round_up(x, m):
    return _cdiv(x, m) * m


def _sublane_multiple(dtype):
    # Sub-32-bit dtypes pack along sublanes; keep block rows at the native tile.
    itemsize = jnp.dtype(dtype).itemsize
    packing = max(1, 4 // itemsize)
    return 8 * packing


def _make_mse_kernel(row_tile, blocks_per_shard, valid_rows, num_full_blocks,
                     total_grid_blocks, cast_f32):
    groups = row_tile // ACC_SUBLANES
    needs_mask = num_full_blocks < total_grid_blocks

    def kernel(x_ref, y_ref, out_ref, acc_ref):
        s = pl.program_id(0)          # shard (parallel across TCs on v7x)
        j = pl.program_id(1)          # block within shard (reduction axis)
        gblk = s * blocks_per_shard + j   # logical global block id

        @pl.when(j == 0)
        def _init():
            acc_ref[...] = jnp.zeros_like(acc_ref)

        def accumulate(masked):
            x = x_ref[...]
            y = y_ref[...]
            if cast_f32:
                x = x.astype(jnp.float32)
                y = y.astype(jnp.float32)
            d = x - y
            if masked:
                # Rows at or past `valid_rows` hold unspecified data (ragged
                # last block / clamped duplicate block); zero them before
                # squaring so even NaN/Inf garbage cannot leak.
                row_ids = gblk * row_tile + jax.lax.broadcasted_iota(
                    jnp.int32, (row_tile, LANES), 0)
                d = jnp.where(row_ids < valid_rows, d, 0.0)
            d2 = d * d
            # Fold the whole tile into a single (8, 128) vreg with pure VPU
            # adds (sublane-aligned reshape, no XLU per step).
            acc_ref[...] += jnp.sum(
                d2.reshape(groups, ACC_SUBLANES, LANES), axis=0)

        if not needs_mask:
            accumulate(False)
        elif num_full_blocks == 0:
            accumulate(True)
        else:
            @pl.when(gblk < num_full_blocks)
            def _interior():
                accumulate(False)

            @pl.when(gblk >= num_full_blocks)
            def _edge():
                accumulate(True)

        @pl.when(j == pl.num_programs(1) - 1)
        def _finalize():
            # One cross-lane reduce per shard; scaling happens in the wrapper.
            out_ref[0, 0] = jnp.sum(acc_ref[...])

    return kernel


def mse_metric(toutputs, tlabels, max_row_tile=None):
    """Pallas equivalent of MSEMetric.forward: mean((x - y)^2) * 255**2 -> float."""
    assert toutputs.shape == tlabels.shape, "shape mismatch"
    n_elems = toutputs.size
    assert n_elems > 0

    x_flat = jnp.ravel(toutputs)
    y_flat = jnp.ravel(tlabels)

    rows = n_elems // LANES
    tail = n_elems - rows * LANES
    scale = float(DATA_RANGE ** 2) / float(n_elems)

    # Fold the <128-element tail in the wrapper (tiny op) instead of padding
    # the whole array (which would re-read + re-write every element in HBM).
    tail_ssq = 0.0
    if tail > 0:
        xt = x_flat[rows * LANES:].astype(jnp.float32)
        yt = y_flat[rows * LANES:].astype(jnp.float32)
        dt = xt - yt
        tail_ssq = jnp.sum(dt * dt)

    if rows == 0:
        # Fewer than 128 elements: nothing worth a kernel launch.
        return float(jax.device_get(tail_ssq * scale))

    if tail > 0:
        # Lane-aligned prefix.  This slice is a copy only for inputs whose
        # element count is not a multiple of 128 (no zero-copy 2-D view exists
        # for those); aligned inputs take the zero-copy reshape below.
        x2d = x_flat[:rows * LANES].reshape(rows, LANES)
        y2d = y_flat[:rows * LANES].reshape(rows, LANES)
    else:
        x2d = x_flat.reshape(rows, LANES)
        y2d = y_flat.reshape(rows, LANES)

    itemsize = jnp.dtype(toutputs.dtype).itemsize
    sub_mult = _sublane_multiple(toutputs.dtype)
    if max_row_tile is None:
        max_row_tile = MAX_BLOCK_BYTES // (LANES * itemsize)
    max_row_tile = max(sub_mult, (max_row_tile // sub_mult) * sub_mult)

    row_tile = min(max_row_tile, _round_up(rows, sub_mult))
    num_blocks = _cdiv(rows, row_tile)
    num_shards = NUM_SHARDS if num_blocks >= NUM_SHARDS else 1
    blocks_per_shard = _cdiv(num_blocks, num_shards)
    total_grid_blocks = num_shards * blocks_per_shard
    num_full_blocks = rows // row_tile        # blocks entirely inside `rows`
    cast_f32 = toutputs.dtype != jnp.float32
    last_block = num_blocks - 1

    def in_map(s, j):
        # Clamp so redundant grid points (odd block counts split over two
        # shards) revisit the last valid block instead of issuing a fully
        # out-of-bounds DMA; their contribution is masked to zero in-kernel
        # via the *logical* block id.
        return (jnp.minimum(s * blocks_per_shard + j, last_block), 0)

    kernel = _make_mse_kernel(row_tile, blocks_per_shard, rows,
                              num_full_blocks, total_grid_blocks, cast_f32)

    bulk_elems = rows * LANES
    cost = pl.CostEstimate(
        flops=3 * bulk_elems,
        transcendentals=0,
        bytes_accessed=2 * bulk_elems * itemsize + 4 * num_shards,
    )

    partials = pl.pallas_call(
        kernel,
        out_shape=jax.ShapeDtypeStruct((num_shards, 1), jnp.float32),
        grid_spec=pltpu.PrefetchScalarGridSpec(
            num_scalar_prefetch=0,
            grid=(num_shards, blocks_per_shard),
            in_specs=[
                pl.BlockSpec((row_tile, LANES), in_map),
                pl.BlockSpec((row_tile, LANES), in_map),
            ],
            out_specs=pl.BlockSpec(
                (1, 1), lambda s, j: (s, 0), memory_space=pltpu.SMEM),
            scratch_shapes=[pltpu.VMEM((ACC_SUBLANES, LANES), jnp.float32)],
        ),
        compiler_params=pltpu.CompilerParams(
            dimension_semantics=("parallel", "arbitrary"),
            vmem_limit_bytes=VMEM_LIMIT_BYTES,
        ),
        cost_estimate=cost,
    )(x2d, y2d)

    total = (jnp.sum(partials) + tail_ssq) * scale
    # Mimic `mse.item()`: return a Python float (device_get blocks).
    return float(jax.device_get(total))


def _reference(toutputs, tlabels):
    xf = toutputs.astype(jnp.float32)
    yf = tlabels.astype(jnp.float32)
    return float(jnp.mean((xf - yf) ** 2) * DATA_RANGE ** 2)


if __name__ == "__main__":
    key = jax.random.PRNGKey(0)
    ks = jax.random.split(key, 8)

    def check(got, ref, name):
        assert abs(got - ref) <= 1e-3 * max(1.0, abs(ref)), (name, got, ref)

    # Case 1: lane-aligned NCHW pair -> zero-copy reshape, no mask, no tail.
    a = jax.random.uniform(ks[0], (2, 4, 16, 16), dtype=jnp.float32)
    b = jax.random.uniform(ks[1], (2, 4, 16, 16), dtype=jnp.float32)
    check(mse_metric(a, b), _reference(a, b), "aligned")

    # Case 2: ragged element count -> wrapper tail + in-kernel sublane mask.
    a = jax.random.uniform(ks[2], (2, 3, 33, 33), dtype=jnp.float32)
    b = jax.random.uniform(ks[3], (2, 3, 33, 33), dtype=jnp.float32)
    check(mse_metric(a, b), _reference(a, b), "ragged")

    # Case 3: multi-block, two-shard (even split) accumulator path.
    a = jax.random.uniform(ks[4], (4, 8, 64, 64), dtype=jnp.float32)
    b = jax.random.uniform(ks[5], (4, 8, 64, 64), dtype=jnp.float32)
    check(mse_metric(a, b, max_row_tile=64), _reference(a, b), "two_shard_even")

    # Case 4: odd block count over two shards -> exercises the clamped
    # (fully-masked) duplicate grid point.
    a = jax.random.uniform(ks[6], (5, 8, 8, 16), dtype=jnp.float32)
    b = jax.random.uniform(ks[7], (5, 8, 8, 16), dtype=jnp.float32)
    check(mse_metric(a, b, max_row_tile=8), _reference(a, b), "two_shard_odd")

    # Case 5: bf16 streamed in native dtype, cast to f32 in-kernel.
    abf = a.astype(jnp.bfloat16)
    bbf = b.astype(jnp.bfloat16)
    check(mse_metric(abf, bbf), _reference(abf, bbf), "bf16")

    jax.block_until_ready(jnp.zeros(()))
    print("KERNEL_OK")
</pallas_src>

<mosaic_0001>
module attributes {stable_mosaic.version = 11 : i64} {
  func.func @kernel(%arg0: i32, %arg1: i32, %arg2: memref<16x128xf32, #tpu.memory_space<vmem>>, %arg3: memref<16x128xf32, #tpu.memory_space<vmem>>, %arg4: memref<1x1xf32, #tpu.memory_space<smem>>, %arg5: memref<8x128xf32, #tpu.memory_space<vmem>>) attributes {dimension_semantics = [#tpu.dimension_semantics<parallel>, #tpu.dimension_semantics<arbitrary>], iteration_bounds = array<i64: 1, 1>, scalar_prefetch = 0 : i64, scratch_operands = 1 : i64, tpu.core_type = #tpu.core_type<tc>, window_params = [{transform_indices = @transform_0, window_bounds = array<i64: 16, 128>}, {transform_indices = @transform_1, window_bounds = array<i64: 16, 128>}, {transform_indices = @transform_2, window_bounds = array<i64: 1, 1>}]} {
    %c0_i32 = arith.constant 0 : i32
    %0 = arith.cmpi eq, %arg1, %c0_i32 : i32
    %1 = arith.extui %0 : i1 to i32
    %c0_i32_0 = arith.constant 0 : i32
    %2 = arith.cmpi ne, %1, %c0_i32_0 : i32
    scf.if %2 {
      %cst_10 = arith.constant 0.000000e+00 : f32
      %15 = vector.broadcast %cst_10 : f32 to vector<8x128xf32>
      %c0_11 = arith.constant 0 : index
      %c0_12 = arith.constant 0 : index
      %16 = vector.load %arg5[%c0_11, %c0_12] : memref<8x128xf32, #tpu.memory_space<vmem>>, vector<8x128xf32>
      tpu.vector_store %arg5[%c0_11, %c0_12], %15 {strides = array<i32>} : memref<8x128xf32, #tpu.memory_space<vmem>>, vector<8x128xf32>,
    } else {
    }
    %c0 = arith.constant 0 : index
    %c0_1 = arith.constant 0 : index
    %3 = vector.load %arg2[%c0, %c0_1] : memref<16x128xf32, #tpu.memory_space<vmem>>, vector<16x128xf32>
    %c0_2 = arith.constant 0 : index
    %c0_3 = arith.constant 0 : index
    %4 = vector.load %arg3[%c0_2, %c0_3] : memref<16x128xf32, #tpu.memory_space<vmem>>, vector<16x128xf32>
    %5 = arith.subf %3, %4 : vector<16x128xf32>
    %6 = arith.mulf %5, %5 : vector<16x128xf32>
    %c0_4 = arith.constant 0 : index
    %c0_5 = arith.constant 0 : index
    %7 = vector.load %arg5[%c0_4, %c0_5] : memref<8x128xf32, #tpu.memory_space<vmem>>, vector<8x128xf32>
    %8 = vector.shape_cast %6 : vector<16x128xf32> to vector<2x8x128xf32>
    %cst = arith.constant dense<0.000000e+00> : vector<8x128xf32>
    %9 = vector.multi_reduction <add>, %8, %cst [0] : vector<2x8x128xf32> to vector<8x128xf32>
    %10 = arith.addf %7, %9 : vector<8x128xf32>
    %c0_6 = arith.constant 0 : index
    %c0_7 = arith.constant 0 : index
    %11 = vector.load %arg5[%c0_6, %c0_7] : memref<8x128xf32, #tpu.memory_space<vmem>>, vector<8x128xf32>
    tpu.vector_store %arg5[%c0_6, %c0_7], %10 {strides = array<i32>} : memref<8x128xf32, #tpu.memory_space<vmem>>, vector<8x128xf32>,
    %c0_i32_8 = arith.constant 0 : i32
    %12 = arith.cmpi eq, %arg1, %c0_i32_8 : i32
    %13 = arith.extui %12 : i1 to i32
    %c0_i32_9 = arith.constant 0 : i32
    %14 = arith.cmpi ne, %13, %c0_i32_9 : i32
    scf.if %14 {
      %c0_10 = arith.constant 0 : index
      %c0_11 = arith.constant 0 : index
      %15 = vector.load %arg5[%c0_10, %c0_11] : memref<8x128xf32, #tpu.memory_space<vmem>>, vector<8x128xf32>
      %16 = vector.shape_cast %15 : vector<8x128xf32> to vector<1x8x128xf32>
      %cst_12 = arith.constant dense<0.000000e+00> : vector<1xf32>
      %17 = vector.multi_reduction <add>, %16, %cst_12 [1, 2] : vector<1x8x128xf32> to vector<1xf32>
      %18 = vector.shape_cast %17 : vector<1xf32> to vector<1x1x1xf32>
      %19 = vector.extract %18[0, 0, 0] : f32 from vector<1x1x1xf32>
      %c0_13 = arith.constant 0 : index
      %c0_14 = arith.constant 0 : index
      %20 = memref.load %arg4[%c0_13, %c0_14] : memref<1x1xf32, #tpu.memory_space<smem>>
      memref.store %19, %arg4[%c0_13, %c0_14] : memref<1x1xf32, #tpu.memory_space<smem>>
    } else {
    }
    return
  }
  func.func @transform_0(%arg0: i32, %arg1: i32) -> (i32, i32) {
    %c1_i32 = arith.constant 1 : i32
    %0 = arith.muli %arg0, %c1_i32 : i32
    %1 = arith.addi %0, %arg1 : i32
    %c0_i32 = arith.constant 0 : i32
    %2 = arith.minsi %1, %c0_i32 : i32
    %c0_i32_0 = arith.constant 0 : i32
    %c0_i32_1 = arith.constant 0 : i32
    return %2, %c0_i32_0 : i32, i32
  }
  func.func @transform_1(%arg0: i32, %arg1: i32) -> (i32, i32) {
    %c1_i32 = arith.constant 1 : i32
    %0 = arith.muli %arg0, %c1_i32 : i32
    %1 = arith.addi %0, %arg1 : i32
    %c0_i32 = arith.constant 0 : i32
    %2 = arith.minsi %1, %c0_i32 : i32
    %c0_i32_0 = arith.constant 0 : i32
    %c0_i32_1 = arith.constant 0 : i32
    return %2, %c0_i32_0 : i32, i32
  }
  func.func @transform_2(%arg0: i32, %arg1: i32) -> (i32, i32) {
    %c0_i32 = arith.constant 0 : i32
    %c0_i32_0 = arith.constant 0 : i32
    return %arg0, %c0_i32 : i32, i32
  }
}

</mosaic_0001>

<llo_original>
// kernel: tpu_custom_call.1
$region0: #{tpu_custom_call.1}
  #allocation0 [shape = 'u32[]', space=smem, size = 0x4, offset = 0x4, fixed_abs, tag = 'smem constant byte address 0x4 - core index']
  #allocation1 [shape = 'u32[144,128]{1,0:T(1,128)}', space=vmem, size = 0x12000, scoped, tag = 'internal scratch']
  #allocation2 [shape = 'f32[8,128]{1,0:T(8,128)}', space=vmem, size = 0x1000, scoped, tag = 'scratch operand']
  %s0 = inlined_call_operand.hbm [shape: f32[16,128], index: 0, kind: input, shape index: {}]
  %s1 = inlined_call_operand.hbm [shape: f32[16,128], index: 1, kind: input, shape index: {}]
  %s2 = inlined_call_operand.hbm [shape: f32[1,1], index: 2, kind: output, shape index: {}]
  %s3 = sld [smem:[#allocation0]]
  $region34: #{tpu_custom_call.1} parent=0
    _
  %s5 = ssub.s32 1, %s3
  %s6 = scalar_select 0, %s5, %s3
  $region1: #{tpu_custom_call.1} parent=0
    #allocation3 [shape = 'u8[8192]{0}', space=vmem, size = 0x2000, scoped, tag = 'input window, operand 0, single buffered']
    #allocation4 [shape = 's32[1]{0}', space=sflag, size = 0x4, scoped, tag = 'scoped memory for tpu_custom_call.1']
    #allocation5 [shape = 's32[1]{0}', space=sflag, size = 0x4, scoped, tag = 'scoped memory for tpu_custom_call.1']
    #allocation6 [shape = 'u8[8192]{0}', space=vmem, size = 0x2000, scoped, tag = 'input window, operand 1, single buffered']
    #allocation7 [shape = 's32[1]{0}', space=sflag, size = 0x4, scoped, tag = 'scoped memory for tpu_custom_call.1']
    #allocation8 [shape = 'u8[512]{0}', space=smem, size = 0x200, scoped, tag = 'output window, operand 0, single buffered']
    %7 = vsyncpa [#allocation4], 0
    %8 = vsyncpa [#allocation7], 0
    %9 = vsyncpa [#allocation5], 0
    // Predicated region
    $region2: #{tpu_custom_call.1} parent=1 // pred_check
      _
    $region3: #{tpu_custom_call.1} parent=1 // pred_check_branch
      %11 = sbr.rel (0) target = $region5
    $region4: #{tpu_custom_call.1} parent=1 // pred_region
      %s12 = sadd.s32 0, 0
      %p13 = scmp.lt.s32.totalorder %s12, 0
      %s14 = scalar_select %p13, %s12, 0
      %s15 = smul.u32 2, %s14
      %s17 = ssub.s32 256, 256
      %18 = vsyncadd [#allocation4], %s17
      %s19 = smul.addr %s15, 128
      %s20 = scalar_lea.hbm %s0, %s19
      %s21 = sshll.u32 [#allocation3], 4
      %s22 = int_to_ptr.vmem [resolvable:$true] %s21
      %27 = dma.hbm_to_vmem [thread:$0]  %s20, 256, %s22, [#allocation4], 128, 128, 8
    $region5: #{tpu_custom_call.1} parent=1 // pred_fallthru
      _
    // Predicated region
    $region6: #{tpu_custom_call.1} parent=1 // pred_check
      _
    $region7: #{tpu_custom_call.1} parent=1 // pred_check_branch
      %29 = sbr.rel (0) target = $region9
    $region8: #{tpu_custom_call.1} parent=1 // pred_region
      %s30 = sadd.s32 0, 0
      %p31 = scmp.lt.s32.totalorder %s30, 0
      %s32 = scalar_select %p31, %s30, 0
      %s33 = smul.u32 2, %s32
      %s35 = ssub.s32 256, 256
      %36 = vsyncadd [#allocation7], %s35
      %s37 = smul.addr %s33, 128
      %s38 = scalar_lea.hbm %s1, %s37
      %s39 = sshll.u32 [#allocation6], 4
      %s40 = int_to_ptr.vmem [resolvable:$true] %s39
      %45 = dma.hbm_to_vmem [thread:$0]  %s38, 256, %s40, [#allocation7], 128, 128, 8
    $region9: #{tpu_custom_call.1} parent=1 // pred_fallthru
      _
    // Predicated region
    $region10: #{tpu_custom_call.1} parent=1 // pred_check
      _
    $region11: #{tpu_custom_call.1} parent=1 // pred_check_branch
      %47 = sbr.rel (0) target = $region13
    $region12: #{tpu_custom_call.1} parent=1 // pred_region
      %48 = dma.done [#allocation4], 256
    $region13: #{tpu_custom_call.1} parent=1 // pred_fallthru
      _
    // Predicated region
    $region14: #{tpu_custom_call.1} parent=1 // pred_check
      _
    $region15: #{tpu_custom_call.1} parent=1 // pred_check_branch
      %50 = sbr.rel (0) target = $region17
    $region16: #{tpu_custom_call.1} parent=1 // pred_region
      %51 = dma.done [#allocation7], 256
    $region17: #{tpu_custom_call.1} parent=1 // pred_fallthru
      _
    %s52 = sadd.s32 0, 0
    %p53 = scmp.lt.s32.totalorder %s52, 0
    %s54 = scalar_select %p53, %s52, 0
    %s55 = smul.u32 2, %s54
    %s56 = sadd.s32 0, 0
    %p57 = scmp.lt.s32.totalorder %s56, 0
    %s58 = scalar_select %p57, %s56, 0
    %s59 = smul.u32 2, %s58
    %p60 = scmp.eq.s32.totalorder 0, 0
    // Predicated region
    $region18: #{tpu_custom_call.1} parent=1 // pred_check
      %p61 = pneg %p60
    $region19: #{tpu_custom_call.1} parent=1 // pred_check_branch
      %63 = sbr.rel (%p61) target = $region21
    $region20: #{tpu_custom_call.1} parent=1 // pred_region
      %64 = vst [vmem:[#allocation2] sm:$0xff] 0.0
    $region21: #{tpu_custom_call.1} parent=1 // pred_fallthru
      _
    %v65 = vld [vmem:[#allocation3] sm:$0xff]
    %v66 = vld [vmem:[#allocation3 + $0x8] sm:$0xff]
    %v67 = vld [vmem:[#allocation6] sm:$0xff]
    %v68 = vld [vmem:[#allocation6 + $0x8] sm:$0xff]
    %v69 = vsub.f32 %v65, %v67
    %v70 = vsub.f32 %v66, %v68
    %v71 = vmul.f32 %v69, %v69
    %v72 = vmul.f32 %v70, %v70
    %v73 = vld [vmem:[#allocation2] sm:$0xff]
    %v74 = vadd.f32 %v71, %v72
    %v75 = vadd.f32 %v73, %v74
    %76 = vst [vmem:[#allocation2] sm:$0xff] %v75
    // Predicated region
    $region22: #{tpu_custom_call.1} parent=1 // pred_check
      %p77 = pneg %p60
    $region23: #{tpu_custom_call.1} parent=1 // pred_check_branch
      %79 = sbr.rel (%p77) target = $region25
    $region24: #{tpu_custom_call.1} parent=1 // pred_region
      %v80 = vld [vmem:[#allocation2] sm:$0xff]
      %81 = vadd.xlane.f32.xlu0 %v80
      %v82 = vpop.xlane.xlu0 %81
      %v83 = vrot.slane %v82, 4
      %v84 = vadd.f32 %v82, %v83
      %v85 = vrot.slane %v84, 2
      %v86 = vadd.f32 %v84, %v85
      %v87 = vrot.slane %v86, 1
      %v88 = vadd.f32 %v86, %v87
      %s89 = vtos %v88
      %s90 = scalar_lea.smem [#allocation8], 0
      %91 = sst [smem:[%s90]] %s89
    $region25: #{tpu_custom_call.1} parent=1 // pred_fallthru
      _
    // Predicated region
    $region26: #{tpu_custom_call.1} parent=1 // pred_check
      _
    $region27: #{tpu_custom_call.1} parent=1 // pred_check_branch
      %93 = sbr.rel (0) target = $region29
    $region28: #{tpu_custom_call.1} parent=1 // pred_region
      %s95 = ssub.s32 16, 16
      %96 = vsyncadd [#allocation5], %s95
      %99 = dma.smem_to_hbm [#allocation8], 16, %s2, [#allocation5]
    $region29: #{tpu_custom_call.1} parent=1 // pred_fallthru
      _
    // Predicated region
    $region30: #{tpu_custom_call.1} parent=1 // pred_check
      _
    $region31: #{tpu_custom_call.1} parent=1 // pred_check_branch
      %101 = sbr.rel (0) target = $region33
    $region32: #{tpu_custom_call.1} parent=1 // pred_region
      %102 = dma.done [#allocation5], 16
    $region33: #{tpu_custom_call.1} parent=1 // pred_fallthru
      _
    %103 = sfence
    %104 = vsyncpa [#allocation4], 1
    %105 = vsyncpa [#allocation7], 1
    %106 = vsyncpa [#allocation5], 1

</llo_original>
